<compile_context>
chip_gen: v5e
topology: v5e:2x2
jax: 0.10.0
libtpu: 0.0.40
codegen_flags: <defaults>
</compile_context>

<pallas_src>
import functools

import jax
import jax.numpy as jnp
from jax import lax
from jax.experimental import pallas as pl
from jax.experimental.pallas import tpu as pltpu


_MIB = 1024 * 1024
_X_TILE_BUDGET = 16 * _MIB     # budget for the double-buffered x tile (+ acc)
_W0_KBLOCK_BYTES = 12 * _MIB   # K-block linear0 once resident w0 exceeds this
_W0_CHUNK_TARGET = 6 * _MIB    # target bytes of one (tk, lcd*lcd) w0 block
_VMEM_LIMIT_CAP = 56 * _MIB    # stay under v7x's 64 MiB physical VMEM per TC


def _leaky_relu(x, slope=0.2):
    return jnp.where(x >= 0, x, slope * x)


def _stable_sigmoid(x):
    # Numerically stable two-sided sigmoid: exp on the EUP, one VPU divide.
    z = jnp.exp(-jnp.abs(x))
    p = z / (1.0 + z)
    return jnp.where(x >= 0, 1.0 - p, p)


def _head(h, w1_ref, b1_ref, w2_ref, b2_ref, o_ref):
    """linear1 -> LeakyReLU -> linear2 -> sigmoid, lane-dense (1, tb) store."""
    z = jnp.dot(h.astype(jnp.bfloat16), w1_ref[...],
                preferred_element_type=jnp.float32) + b1_ref[...]
    z = _leaky_relu(z)
    # 256 -> 1 as a 1-row f32 matmul (w2 @ z^T) so the logits come out already
    # laid out along lanes: full-width stores + a wide HBM writeback instead of
    # per-row masked vst.msk on a last-dim-1 block.
    logit = lax.dot_general(w2_ref[...], z,
                            dimension_numbers=(((1,), (1,)), ((), ())),
                            preferred_element_type=jnp.float32) + b2_ref[...]
    o_ref[...] = _stable_sigmoid(logit).astype(o_ref.dtype)


def _disc_kernel_full(x_ref, w0_ref, b0_ref, w1_ref, b1_ref, w2_ref, b2_ref, o_ref):
    """Path with linear0, w0 fully VMEM-resident (small / medium lcd)."""
    x = x_ref[...].astype(jnp.bfloat16)
    h0 = jnp.dot(x, w0_ref[...], preferred_element_type=jnp.float32) + b0_ref[...]
    _head(_leaky_relu(h0), w1_ref, b1_ref, w2_ref, b2_ref, o_ref)


def _disc_kernel_full_kblocked(x_ref, w0_ref, b0_ref, w1_ref, b1_ref, w2_ref,
                               b2_ref, o_ref, acc_ref):
    """Path with linear0, K (flat_dim) axis blocked; f32 accumulator scratch."""
    k = pl.program_id(1)

    @pl.when(k == 0)
    def _():
        acc_ref[...] = jnp.zeros_like(acc_ref)

    acc_ref[...] += jnp.dot(x_ref[...].astype(jnp.bfloat16), w0_ref[...],
                            preferred_element_type=jnp.float32)

    @pl.when(k == pl.num_programs(1) - 1)
    def _():
        h0 = acc_ref[...] + b0_ref[...]
        _head(_leaky_relu(h0), w1_ref, b1_ref, w2_ref, b2_ref, o_ref)


def _disc_kernel_short(x_ref, w1_ref, b1_ref, w2_ref, b2_ref, o_ref):
    """Path without linear0 (flattened input dim == lcd*lcd)."""
    _head(x_ref[...], w1_ref, b1_ref, w2_ref, b2_ref, o_ref)


def init_params(key, lcd):
    """Deterministic init. Matmul weights stored (in, out) in bf16; biases and
    the tiny 256->1 row kept in f32."""
    d_in0 = lcd * lcd * 10
    d_h0 = lcd * lcd
    k = jax.random.split(key, 6)

    def uinit(kk, fan_in, shape, dtype=jnp.float32):
        bound = 1.0 / jnp.sqrt(fan_in)
        return jax.random.uniform(kk, shape, jnp.float32, -bound, bound).astype(dtype)

    return {
        "w0": uinit(k[0], d_in0, (d_in0, d_h0), jnp.bfloat16),
        "b0": uinit(k[1], d_in0, (1, d_h0)),
        "w1": uinit(k[2], d_h0, (d_h0, 256), jnp.bfloat16),
        "b1": uinit(k[3], d_h0, (1, 256)),
        "w2": uinit(k[4], 256, (1, 256)),   # linear2 (256 -> 1) as a row
        "b2": uinit(k[5], 256, (1, 1)),
    }


def _round_up(n, m):
    return ((n + m - 1) // m) * m


def _choose_batch_tile(batch, per_row_bytes):
    """Batch tile from a per-generation-safe VMEM byte budget."""
    cap = _X_TILE_BUDGET // max(per_row_bytes, 1)
    cap = max(128, min(2048, (cap // 128) * 128))
    if batch <= cap:
        if batch >= 512:
            # >= 2 tiles so ("parallel",) can shard across both v7x TensorCores.
            return _round_up(-(-batch // 2), 128)
        return batch          # single tile: block dim == full dim, any size ok
    return cap                # multiple of 128, gives >= 2 tiles


def _choose_k_tile(flat_dim, d_h0):
    """Largest tk that divides flat_dim, is a multiple of 128, and keeps the
    (tk, d_h0) bf16 w0 block under the chunk target. None if impossible."""
    for g in range(2, max(flat_dim // 128, 1) + 1):
        if flat_dim % g:
            continue
        tk = flat_dim // g
        if tk % 128:
            continue
        if tk * d_h0 * 2 <= _W0_CHUNK_TARGET:
            return tk
    return None


def _vmem_limit_bytes(needed):
    return int(min(max(needed + 16 * _MIB, 32 * _MIB), _VMEM_LIMIT_CAP))


def _resident_spec(arr, index_map):
    """Whole-array, constant-index block: VMEM-resident across the batch loop,
    single-buffered (the block never changes, double-buffering wastes VMEM)."""
    try:
        return pl.BlockSpec(arr.shape, index_map, pipeline_mode=pl.Buffered(1))
    except (TypeError, ValueError):   # older Pallas without per-spec buffering
        return pl.BlockSpec(arr.shape, index_map)


@functools.partial(jax.jit, static_argnames=("lcd", "batch_size", "w0_kblock_bytes"))
def discriminator_z_forward(x, params, *, lcd, batch_size,
                            w0_kblock_bytes=_W0_KBLOCK_BYTES):
    # Mirrors x.view(batch_size, -1). x should arrive in bf16 from its producer
    # (no standalone wrapper cast pass); f32 x is simply cast inside the kernel.
    x2d = x.reshape(batch_size, -1)
    flat_dim = x2d.shape[-1]
    d_h0 = lcd * lcd
    x_bytes = x2d.dtype.itemsize

    use_linear0 = flat_dim > d_h0
    w0_bytes = params["w0"].size * params["w0"].dtype.itemsize
    w1_bytes = params["w1"].size * params["w1"].dtype.itemsize

    tk = _choose_k_tile(flat_dim, d_h0) if use_linear0 else None
    k_blocked = use_linear0 and (tk is not None) and (w0_bytes > w0_kblock_bytes)

    if k_blocked:
        per_row = 2 * tk * x_bytes + d_h0 * 4          # x double-buffer + f32 acc
    else:
        per_row = 2 * flat_dim * x_bytes
    tb = _choose_batch_tile(batch_size, per_row)
    grid_n = pl.cdiv(batch_size, tb)

    # Lane-dense logits: one (1, tb) row per batch tile.
    out_shape = jax.ShapeDtypeStruct((1, grid_n * tb), jnp.float32)

    if k_blocked:
        needed = (2 * tb * tk * x_bytes + 2 * tk * d_h0 * 2 + w1_bytes
                  + tb * d_h0 * 4 + tb * 256 * 4 + 2 * tb * 4)
    else:
        needed = (2 * tb * flat_dim * x_bytes
                  + (w0_bytes if use_linear0 else 0) + w1_bytes
                  + tb * (d_h0 + 256) * 4 + 2 * tb * 4)
    vmem_limit = _vmem_limit_bytes(needed)

    if use_linear0 and not k_blocked:
        res = lambda a: _resident_spec(a, lambda i: (0, 0))
        out = pl.pallas_call(
            _disc_kernel_full,
            grid=(grid_n,),
            in_specs=[
                pl.BlockSpec((tb, flat_dim), lambda i: (i, 0)),
                res(params["w0"]), res(params["b0"]),
                res(params["w1"]), res(params["b1"]),
                res(params["w2"]), res(params["b2"]),
            ],
            out_specs=pl.BlockSpec((1, tb), lambda i: (0, i)),
            out_shape=out_shape,
            compiler_params=pltpu.CompilerParams(
                dimension_semantics=("parallel",),
                vmem_limit_bytes=vmem_limit),
        )(x2d, params["w0"], params["b0"], params["w1"], params["b1"],
          params["w2"], params["b2"])
    elif use_linear0:
        kt = flat_dim // tk
        res = lambda a: _resident_spec(a, lambda i, k: (0, 0))
        out = pl.pallas_call(
            _disc_kernel_full_kblocked,
            grid=(grid_n, kt),                          # K last, "arbitrary"
            in_specs=[
                pl.BlockSpec((tb, tk), lambda i, k: (i, k)),
                pl.BlockSpec((tk, d_h0), lambda i, k: (k, 0)),
                res(params["b0"]),
                res(params["w1"]), res(params["b1"]),
                res(params["w2"]), res(params["b2"]),
            ],
            out_specs=pl.BlockSpec((1, tb), lambda i, k: (0, i)),
            out_shape=out_shape,
            scratch_shapes=[pltpu.VMEM((tb, d_h0), jnp.float32)],
            compiler_params=pltpu.CompilerParams(
                dimension_semantics=("parallel", "arbitrary"),
                vmem_limit_bytes=vmem_limit),
        )(x2d, params["w0"], params["b0"], params["w1"], params["b1"],
          params["w2"], params["b2"])
    else:
        res = lambda a: _resident_spec(a, lambda i: (0, 0))
        out = pl.pallas_call(
            _disc_kernel_short,
            grid=(grid_n,),
            in_specs=[
                pl.BlockSpec((tb, flat_dim), lambda i: (i, 0)),
                res(params["w1"]), res(params["b1"]),
                res(params["w2"]), res(params["b2"]),
            ],
            out_specs=pl.BlockSpec((1, tb), lambda i: (0, i)),
            out_shape=out_shape,
            compiler_params=pltpu.CompilerParams(
                dimension_semantics=("parallel",),
                vmem_limit_bytes=vmem_limit),
        )(x2d, params["w1"], params["b1"], params["w2"], params["b2"])

    # Lane-dense (1, grid_n*tb) row back to the module's (batch, 1) output.
    return out[0, :batch_size].reshape(batch_size, 1)


def _reference_forward(x, params, lcd, batch_size):
    """Pure-JAX reference replicating the kernel's bf16 rounding."""
    x2d = x.reshape(batch_size, -1)
    h = x2d.astype(jnp.bfloat16).astype(jnp.float32)
    if x2d.shape[-1] > lcd * lcd:
        h = _leaky_relu(h @ params["w0"].astype(jnp.float32) + params["b0"])
        h = h.astype(jnp.bfloat16).astype(jnp.float32)
    h = _leaky_relu(h @ params["w1"].astype(jnp.float32) + params["b1"])
    logit = jnp.sum(h * params["w2"], axis=-1, keepdims=True) + params["b2"]
    return jax.nn.sigmoid(logit)


if __name__ == "__main__":
    key = jax.random.PRNGKey(0)
    kx1, kx2, kp = jax.random.split(key, 3)

    lcd = 8                      # linear0: 640->64, linear1: 64->256, linear2: 256->1
    params = init_params(kp, lcd)

    # 1) linear0 branch, fused kernel; producer emits bf16 x (MXU-native).
    bs_a = 2
    x_full = jax.random.normal(kx1, (bs_a, 10, lcd, lcd), dtype=jnp.bfloat16)
    out_a = jax.block_until_ready(
        discriminator_z_forward(x_full, params, lcd=lcd, batch_size=bs_a))
    ref_a = _reference_forward(x_full, params, lcd, bs_a)
    assert out_a.shape == (bs_a, 1)
    assert jnp.allclose(out_a, ref_a, atol=1e-2, rtol=1e-2), (out_a, ref_a)

    # 2) Same inputs through the K-blocked linear0 kernel (forced with a tiny
    #    w0 threshold) — the path large lcd takes on real shapes.
    out_kb = jax.block_until_ready(
        discriminator_z_forward(x_full, params, lcd=lcd, batch_size=bs_a,
                                w0_kblock_bytes=0))
    assert jnp.allclose(out_kb, ref_a, atol=1e-2, rtol=1e-2), (out_kb, ref_a)

    # 3) Short path (flat dim == lcd*lcd -> no linear0), ragged batch.
    bs_b = 3
    x_short = jax.random.normal(kx2, (bs_b, 1, lcd, lcd), dtype=jnp.bfloat16)
    out_b = jax.block_until_ready(
        discriminator_z_forward(x_short, params, lcd=lcd, batch_size=bs_b))
    ref_b = _reference_forward(x_short, params, lcd, bs_b)
    assert out_b.shape == (bs_b, 1)
    assert jnp.allclose(out_b, ref_b, atol=1e-2, rtol=1e-2), (out_b, ref_b)

    print("KERNEL_OK")
</pallas_src>

<mosaic_0001>
module attributes {stable_mosaic.version = 11 : i64} {
  func.func @_disc_kernel_full(%arg0: i32, %arg1: memref<2x640xbf16, #tpu.memory_space<vmem>>, %arg2: memref<640x64xbf16, #tpu.memory_space<vmem>>, %arg3: memref<1x64xf32, #tpu.memory_space<vmem>>, %arg4: memref<64x256xbf16, #tpu.memory_space<vmem>>, %arg5: memref<1x256xf32, #tpu.memory_space<vmem>>, %arg6: memref<1x256xf32, #tpu.memory_space<vmem>>, %arg7: memref<1x1xf32, #tpu.memory_space<vmem>>, %arg8: memref<1x2xf32, #tpu.memory_space<vmem>>) attributes {dimension_semantics = [#tpu.dimension_semantics<parallel>], iteration_bounds = array<i64: 1>, scalar_prefetch = 0 : i64, scratch_operands = 0 : i64, tpu.core_type = #tpu.core_type<tc>, window_params = [{transform_indices = @transform_0, window_bounds = array<i64: 2, 640>}, {pipeline_mode = #tpu.pipeline_mode<synchronous>, transform_indices = @transform_1, window_bounds = array<i64: 640, 64>}, {pipeline_mode = #tpu.pipeline_mode<synchronous>, transform_indices = @transform_2, window_bounds = array<i64: 1, 64>}, {pipeline_mode = #tpu.pipeline_mode<synchronous>, transform_indices = @transform_3, window_bounds = array<i64: 64, 256>}, {pipeline_mode = #tpu.pipeline_mode<synchronous>, transform_indices = @transform_4, window_bounds = array<i64: 1, 256>}, {pipeline_mode = #tpu.pipeline_mode<synchronous>, transform_indices = @transform_5, window_bounds = array<i64: 1, 256>}, {pipeline_mode = #tpu.pipeline_mode<synchronous>, transform_indices = @transform_6, window_bounds = array<i64: 1, 1>}, {transform_indices = @transform_7, window_bounds = array<i64: 1, 2>}]} {
    %c0 = arith.constant 0 : index
    %c0_0 = arith.constant 0 : index
    %0 = vector.load %arg1[%c0, %c0_0] : memref<2x640xbf16, #tpu.memory_space<vmem>>, vector<2x640xbf16>
    %c0_1 = arith.constant 0 : index
    %c0_2 = arith.constant 0 : index
    %1 = vector.load %arg2[%c0_1, %c0_2] : memref<640x64xbf16, #tpu.memory_space<vmem>>, vector<640x64xbf16>
    %cst = arith.constant dense<0.000000e+00> : vector<2x64xf32>
    %2 = tpu.matmul %0, %1, %cst {dimension_numbers = #tpu.dot_dimension_numbers<[1], [0], [0], [1], [0, 0, 1, 1], [], []>} : vector<2x640xbf16>, vector<640x64xbf16>, vector<2x64xf32> -> vector<2x64xf32>
    %c0_3 = arith.constant 0 : index
    %c0_4 = arith.constant 0 : index
    %3 = vector.load %arg3[%c0_3, %c0_4] : memref<1x64xf32, #tpu.memory_space<vmem>>, vector<1x64xf32>
    %4 = vector.broadcast %3 : vector<1x64xf32> to vector<2x64xf32>
    %5 = arith.addf %2, %4 : vector<2x64xf32>
    %cst_5 = arith.constant 0.000000e+00 : f32
    %6 = vector.broadcast %cst_5 : f32 to vector<2x64xf32>
    %7 = arith.cmpf oge, %5, %6 : vector<2x64xf32>
    %cst_6 = arith.constant 2.000000e-01 : f32
    %8 = vector.broadcast %cst_6 : f32 to vector<2x64xf32>
    %9 = arith.mulf %8, %5 : vector<2x64xf32>
    %10 = arith.select %7, %5, %9 : vector<2x64xi1>, vector<2x64xf32>
    %11 = arith.truncf %10 : vector<2x64xf32> to vector<2x64xbf16>
    %c0_7 = arith.constant 0 : index
    %c0_8 = arith.constant 0 : index
    %12 = vector.load %arg4[%c0_7, %c0_8] : memref<64x256xbf16, #tpu.memory_space<vmem>>, vector<64x256xbf16>
    %cst_9 = arith.constant dense<0.000000e+00> : vector<2x256xf32>
    %13 = tpu.matmul %11, %12, %cst_9 {dimension_numbers = #tpu.dot_dimension_numbers<[1], [0], [0], [1], [0, 0, 1, 1], [], []>} : vector<2x64xbf16>, vector<64x256xbf16>, vector<2x256xf32> -> vector<2x256xf32>
    %c0_10 = arith.constant 0 : index
    %c0_11 = arith.constant 0 : index
    %14 = vector.load %arg5[%c0_10, %c0_11] : memref<1x256xf32, #tpu.memory_space<vmem>>, vector<1x256xf32>
    %15 = vector.broadcast %14 : vector<1x256xf32> to vector<2x256xf32>
    %16 = arith.addf %13, %15 : vector<2x256xf32>
    %cst_12 = arith.constant 0.000000e+00 : f32
    %17 = vector.broadcast %cst_12 : f32 to vector<2x256xf32>
    %18 = arith.cmpf oge, %16, %17 : vector<2x256xf32>
    %cst_13 = arith.constant 2.000000e-01 : f32
    %19 = vector.broadcast %cst_13 : f32 to vector<2x256xf32>
    %20 = arith.mulf %19, %16 : vector<2x256xf32>
    %21 = arith.select %18, %16, %20 : vector<2x256xi1>, vector<2x256xf32>
    %c0_14 = arith.constant 0 : index
    %c0_15 = arith.constant 0 : index
    %22 = vector.load %arg6[%c0_14, %c0_15] : memref<1x256xf32, #tpu.memory_space<vmem>>, vector<1x256xf32>
    %cst_16 = arith.constant dense<0.000000e+00> : vector<1x2xf32>
    %23 = tpu.matmul %22, %21, %cst_16 {dimension_numbers = #tpu.dot_dimension_numbers<[1], [1], [0], [0], [0, 0, 1, 0], [], []>} : vector<1x256xf32>, vector<2x256xf32>, vector<1x2xf32> -> vector<1x2xf32>
    %c0_17 = arith.constant 0 : index
    %c0_18 = arith.constant 0 : index
    %24 = vector.load %arg7[%c0_17, %c0_18] : memref<1x1xf32, #tpu.memory_space<vmem>>, vector<1x1xf32>
    %25 = vector.broadcast %24 : vector<1x1xf32> to vector<1x2xf32>
    %26 = arith.addf %23, %25 : vector<1x2xf32>
    %27 = math.absf %26 : vector<1x2xf32>
    %cst_19 = arith.constant 0.000000e+00 : f32
    %28 = vector.broadcast %cst_19 : f32 to vector<1x2xf32>
    %29 = arith.subf %28, %27 : vector<1x2xf32>
    %30 = math.exp %29 : vector<1x2xf32>
    %cst_20 = arith.constant 1.000000e+00 : f32
    %31 = vector.broadcast %cst_20 : f32 to vector<1x2xf32>
    %32 = arith.addf %31, %30 : vector<1x2xf32>
    %33 = arith.divf %30, %32 : vector<1x2xf32>
    %cst_21 = arith.constant 0.000000e+00 : f32
    %34 = vector.broadcast %cst_21 : f32 to vector<1x2xf32>
    %35 = arith.cmpf oge, %26, %34 : vector<1x2xf32>
    %cst_22 = arith.constant 1.000000e+00 : f32
    %36 = vector.broadcast %cst_22 : f32 to vector<1x2xf32>
    %37 = arith.subf %36, %33 : vector<1x2xf32>
    %38 = arith.select %35, %37, %33 : vector<1x2xi1>, vector<1x2xf32>
    %c0_23 = arith.constant 0 : index
    %c0_24 = arith.constant 0 : index
    %39 = vector.load %arg8[%c0_23, %c0_24] : memref<1x2xf32, #tpu.memory_space<vmem>>, vector<1x2xf32>
    tpu.vector_store %arg8[%c0_23, %c0_24], %38 {strides = array<i32>} : memref<1x2xf32, #tpu.memory_space<vmem>>, vector<1x2xf32>,
    return
  }
  func.func @transform_0(%arg0: i32) -> (i32, i32) {
    %c0_i32 = arith.constant 0 : i32
    %c0_i32_0 = arith.constant 0 : i32
    return %arg0, %c0_i32 : i32, i32
  }
  func.func @transform_1(%arg0: i32) -> (i32, i32) {
    %c0_i32 = arith.constant 0 : i32
    %c0_i32_0 = arith.constant 0 : i32
    %c0_i32_1 = arith.constant 0 : i32
    return %c0_i32, %c0_i32_0 : i32, i32
  }
  func.func @transform_2(%arg0: i32) -> (i32, i32) {
    %c0_i32 = arith.constant 0 : i32
    %c0_i32_0 = arith.constant 0 : i32
    %c0_i32_1 = arith.constant 0 : i32
    return %c0_i32, %c0_i32_0 : i32, i32
  }
  func.func @transform_3(%arg0: i32) -> (i32, i32) {
    %c0_i32 = arith.constant 0 : i32
    %c0_i32_0 = arith.constant 0 : i32
    %c0_i32_1 = arith.constant 0 : i32
    return %c0_i32, %c0_i32_0 : i32, i32
  }
  func.func @transform_4(%arg0: i32) -> (i32, i32) {
    %c0_i32 = arith.constant 0 : i32
    %c0_i32_0 = arith.constant 0 : i32
    %c0_i32_1 = arith.constant 0 : i32
    return %c0_i32, %c0_i32_0 : i32, i32
  }
  func.func @transform_5(%arg0: i32) -> (i32, i32) {
    %c0_i32 = arith.constant 0 : i32
    %c0_i32_0 = arith.constant 0 : i32
    %c0_i32_1 = arith.constant 0 : i32
    return %c0_i32, %c0_i32_0 : i32, i32
  }
  func.func @transform_6(%arg0: i32) -> (i32, i32) {
    %c0_i32 = arith.constant 0 : i32
    %c0_i32_0 = arith.constant 0 : i32
    %c0_i32_1 = arith.constant 0 : i32
    return %c0_i32, %c0_i32_0 : i32, i32
  }
  func.func @transform_7(%arg0: i32) -> (i32, i32) {
    %c0_i32 = arith.constant 0 : i32
    %c0_i32_0 = arith.constant 0 : i32
    return %c0_i32, %arg0 : i32, i32
  }
}

</mosaic_0001>

<llo_original>
// kernel: discriminator_z_forward.1
$region0: #{discriminator_z_forward.1}
  #allocation0 [shape = 'u32[]', space=smem, size = 0x4, offset = 0x4, fixed_abs, tag = 'smem constant byte address 0x4 - core index']
  #allocation1 [shape = 'u32[72,128]{1,0:T(1,128)}', space=vmem, size = 0x9000, scoped, tag = 'internal scratch']
  #allocation2 [shape = 'f32[1,1]{1,0:T(1,128)S(1)}', space=vmem, size = 0x200, scoped, tag = 'scoped memory for discriminator_z_forward.1']
  %s0 = inlined_call_operand.vmem [shape: bf16[2,640], index: 0, kind: input, shape index: {}]
  %s1 = inlined_call_operand.vmem [shape: bf16[640,64], index: 1, kind: input, shape index: {}]
  %s2 = inlined_call_operand.vmem [shape: f32[1,64], index: 2, kind: input, shape index: {}]
  %s3 = inlined_call_operand.vmem [shape: bf16[64,256], index: 3, kind: input, shape index: {}]
  %s4 = inlined_call_operand.vmem [shape: f32[1,256], index: 4, kind: input, shape index: {}]
  %s5 = inlined_call_operand.vmem [shape: f32[1,256], index: 5, kind: input, shape index: {}]
  %s6 = inlined_call_operand.<no memory space> [shape: f32[1,1], index: 6, kind: input, shape index: {}]
  %s7 = inlined_call_operand.hbm [shape: f32[1,2], index: 7, kind: output, shape index: {}]
  %s8 = sld [smem:[#allocation0]]
  $region38: #{discriminator_z_forward.1} parent=0
    _
  %s10 = ssub.s32 1, %s8
  %s11 = scalar_select 0, %s10, %s8
  %v12 = vstv %s6
  %13 = vst [vmem:[#allocation2] sm:$0x1] %v12
  $region1: #{discriminator_z_forward.1} parent=0
    #allocation3 [shape = 'u8[512]{0}', space=vmem, size = 0x400, scoped, tag = 'output window, operand 0, single buffered']
    #allocation4 [shape = 's32[1]{0}', space=sflag, size = 0x4, scoped, tag = 'scoped memory for discriminator_z_forward.1']
    %14 = vsyncpa [#allocation4], 0
    // Predicated region
    $region2: #{discriminator_z_forward.1} parent=1 // pred_check
      _
    $region3: #{discriminator_z_forward.1} parent=1 // pred_check_branch
      %16 = sbr.rel (0) target = $region5
    $region4: #{discriminator_z_forward.1} parent=1 // pred_region
      _
    $region5: #{discriminator_z_forward.1} parent=1 // pred_fallthru
      _
    // Predicated region
    $region6: #{discriminator_z_forward.1} parent=1 // pred_check
      _
    $region7: #{discriminator_z_forward.1} parent=1 // pred_check_branch
      %18 = sbr.rel (0) target = $region9
    $region8: #{discriminator_z_forward.1} parent=1 // pred_region
      _
    $region9: #{discriminator_z_forward.1} parent=1 // pred_fallthru
      _
    // Predicated region
    $region10: #{discriminator_z_forward.1} parent=1 // pred_check
      _
    $region11: #{discriminator_z_forward.1} parent=1 // pred_check_branch
      %20 = sbr.rel (0) target = $region13
    $region12: #{discriminator_z_forward.1} parent=1 // pred_region
      _
    $region13: #{discriminator_z_forward.1} parent=1 // pred_fallthru
      _
    // Predicated region
    $region14: #{discriminator_z_forward.1} parent=1 // pred_check
      _
    $region15: #{discriminator_z_forward.1} parent=1 // pred_check_branch
      %22 = sbr.rel (0) target = $region17
    $region16: #{discriminator_z_forward.1} parent=1 // pred_region
      _
    $region17: #{discriminator_z_forward.1} parent=1 // pred_fallthru
      _
    // Predicated region
    $region18: #{discriminator_z_forward.1} parent=1 // pred_check
      _
    $region19: #{discriminator_z_forward.1} parent=1 // pred_check_branch
      %24 = sbr.rel (0) target = $region21
    $region20: #{discriminator_z_forward.1} parent=1 // pred_region
      _
    $region21: #{discriminator_z_forward.1} parent=1 // pred_fallthru
      _
    // Predicated region
    $region22: #{discriminator_z_forward.1} parent=1 // pred_check
      _
    $region23: #{discriminator_z_forward.1} parent=1 // pred_check_branch
      %26 = sbr.rel (0) target = $region25
    $region24: #{discriminator_z_forward.1} parent=1 // pred_region
      _
    $region25: #{discriminator_z_forward.1} parent=1 // pred_fallthru
      _
    // Predicated region
    $region26: #{discriminator_z_forward.1} parent=1 // pred_check
      _
    $region27: #{discriminator_z_forward.1} parent=1 // pred_check_branch
      %28 = sbr.rel (0) target = $region29
    $region28: #{discriminator_z_forward.1} parent=1 // pred_region
      _
    $region29: #{discriminator_z_forward.1} parent=1 // pred_fallthru
      _
    %v30 = vld [vmem:[%s0] sm:$0x1f]
    %v31 = vld [vmem:[%s1] sm:$0xf]
    %v32 = vld [vmem:[%s1 + $0x4] sm:$0xf]
    %v33 = vld [vmem:[%s1 + $0x8] sm:$0xf]
    %v34 = vld [vmem:[%s1 + $0xc] sm:$0xf]
    %v35 = vld [vmem:[%s1 + $0x10] sm:$0xf]
    %v36 = vld [vmem:[%s1 + $0x14] sm:$0xf]
    %v37 = vld [vmem:[%s1 + $0x18] sm:$0xf]
    %v38 = vld [vmem:[%s1 + $0x1c] sm:$0xf]
    %v39 = vld [vmem:[%s1 + $0x20] sm:$0xf]
    %v40 = vld [vmem:[%s1 + $0x24] sm:$0xf]
    %v41 = vld [vmem:[%s1 + $0x28] sm:$0xf]
    %v42 = vld [vmem:[%s1 + $0x2c] sm:$0xf]
    %v43 = vld [vmem:[%s1 + $0x30] sm:$0xf]
    %v44 = vld [vmem:[%s1 + $0x34] sm:$0xf]
    %v45 = vld [vmem:[%s1 + $0x38] sm:$0xf]
    %v46 = vld [vmem:[%s1 + $0x3c] sm:$0xf]
    %v47 = vld [vmem:[%s1 + $0x40] sm:$0xf]
    %v48 = vld [vmem:[%s1 + $0x44] sm:$0xf]
    %v49 = vld [vmem:[%s1 + $0x48] sm:$0xf]
    %v50 = vld [vmem:[%s1 + $0x4c] sm:$0xf]
    %v51 = vld [vmem:[%s1 + $0x50] sm:$0xf]
    %v52 = vld [vmem:[%s1 + $0x54] sm:$0xf]
    %v53 = vld [vmem:[%s1 + $0x58] sm:$0xf]
    %v54 = vld [vmem:[%s1 + $0x5c] sm:$0xf]
    %v55 = vld [vmem:[%s1 + $0x60] sm:$0xf]
    %v56 = vld [vmem:[%s1 + $0x64] sm:$0xf]
    %v57 = vld [vmem:[%s1 + $0x68] sm:$0xf]
    %v58 = vld [vmem:[%s1 + $0x6c] sm:$0xf]
    %v59 = vld [vmem:[%s1 + $0x70] sm:$0xf]
    %v60 = vld [vmem:[%s1 + $0x74] sm:$0xf]
    %v61 = vld [vmem:[%s1 + $0x78] sm:$0xf]
    %v62 = vld [vmem:[%s1 + $0x7c] sm:$0xf]
    %v63 = vld [vmem:[%s1 + $0x80] sm:$0xf]
    %v64 = vld [vmem:[%s1 + $0x84] sm:$0xf]
    %v65 = vld [vmem:[%s1 + $0x88] sm:$0xf]
    %v66 = vld [vmem:[%s1 + $0x8c] sm:$0xf]
    %v67 = vld [vmem:[%s1 + $0x90] sm:$0xf]
    %v68 = vld [vmem:[%s1 + $0x94] sm:$0xf]
    %v69 = vld [vmem:[%s1 + $0x98] sm:$0xf]
    %v70 = vld [vmem:[%s1 + $0x9c] sm:$0xf]
    %v71 = vld [vmem:[%s1 + $0xa0] sm:$0xf]
    %v72 = vld [vmem:[%s1 + $0xa4] sm:$0xf]
    %v73 = vld [vmem:[%s1 + $0xa8] sm:$0xf]
    %v74 = vld [vmem:[%s1 + $0xac] sm:$0xf]
    %v75 = vld [vmem:[%s1 + $0xb0] sm:$0xf]
    %v76 = vld [vmem:[%s1 + $0xb4] sm:$0xf]
    %v77 = vld [vmem:[%s1 + $0xb8] sm:$0xf]
    %v78 = vld [vmem:[%s1 + $0xbc] sm:$0xf]
    %v79 = vld [vmem:[%s1 + $0xc0] sm:$0xf]
    %v80 = vld [vmem:[%s1 + $0xc4] sm:$0xf]
    %v81 = vld [vmem:[%s1 + $0xc8] sm:$0xf]
    %v82 = vld [vmem:[%s1 + $0xcc] sm:$0xf]
    %v83 = vld [vmem:[%s1 + $0xd0] sm:$0xf]
    %v84 = vld [vmem:[%s1 + $0xd4] sm:$0xf]
    %v85 = vld [vmem:[%s1 + $0xd8] sm:$0xf]
    %v86 = vld [vmem:[%s1 + $0xdc] sm:$0xf]
    %v87 = vld [vmem:[%s1 + $0xe0] sm:$0xf]
    %v88 = vld [vmem:[%s1 + $0xe4] sm:$0xf]
    %v89 = vld [vmem:[%s1 + $0xe8] sm:$0xf]
    %v90 = vld [vmem:[%s1 + $0xec] sm:$0xf]
    %v91 = vld [vmem:[%s1 + $0xf0] sm:$0xf]
    %v92 = vld [vmem:[%s1 + $0xf4] sm:$0xf]
    %v93 = vld [vmem:[%s1 + $0xf8] sm:$0xf]
    %v94 = vld [vmem:[%s1 + $0xfc] sm:$0xf]
    %v95 = vld [vmem:[%s1 + $0x100] sm:$0xf]
    %v96 = vld [vmem:[%s1 + $0x104] sm:$0xf]
    %v97 = vld [vmem:[%s1 + $0x108] sm:$0xf]
    %v98 = vld [vmem:[%s1 + $0x10c] sm:$0xf]
    %v99 = vld [vmem:[%s1 + $0x110] sm:$0xf]
    %v100 = vld [vmem:[%s1 + $0x114] sm:$0xf]
    %v101 = vld [vmem:[%s1 + $0x118] sm:$0xf]
    %v102 = vld [vmem:[%s1 + $0x11c] sm:$0xf]
    %v103 = vld [vmem:[%s1 + $0x120] sm:$0xf]
    %v104 = vld [vmem:[%s1 + $0x124] sm:$0xf]
    %v105 = vld [vmem:[%s1 + $0x128] sm:$0xf]
    %v106 = vld [vmem:[%s1 + $0x12c] sm:$0xf]
    %v107 = vld [vmem:[%s1 + $0x130] sm:$0xf]
    %v108 = vld [vmem:[%s1 + $0x134] sm:$0xf]
    %v109 = vld [vmem:[%s1 + $0x138] sm:$0xf]
    %v110 = vld [vmem:[%s1 + $0x13c] sm:$0xf]
    %v111 = vld [vmem:[%s2] sm:$0x1]
    %v113 = vperm.slane %v111, 0
    %116 = vst [vmem:[#allocation1] ss:$9 sm:$0xff] %v30
    %v117 = vld [vmem:[#allocation1] sm:$0xff]
    %v118 = vld [vmem:[#allocation1 + $0x9] sm:$0xff]
    %v119 = vld [vmem:[#allocation1 + $0x12] sm:$0xff]
    %v120 = vld [vmem:[#allocation1 + $0x1b] sm:$0xff]
    %v121 = vld [vmem:[#allocation1 + $0x24] sm:$0xff]
    %v207 = vunpack.c.l.b16 %v31
    %v208 = vunpack.c.l.b16 %v32
    %v209 = vunpack.c.l.b16 %v33
    %v210 = vunpack.c.l.b16 %v34
    %v211 = vunpack.c.l.b16 %v35
    %v212 = vunpack.c.l.b16 %v36
    %v213 = vunpack.c.l.b16 %v37
    %v214 = vunpack.c.l.b16 %v38
    %v215 = vunpack.c.l.b16 %v39
    %v216 = vunpack.c.l.b16 %v40
    %v217 = vunpack.c.l.b16 %v41
    %v218 = vunpack.c.l.b16 %v42
    %v219 = vunpack.c.l.b16 %v43
    %v220 = vunpack.c.l.b16 %v44
    %v221 = vunpack.c.l.b16 %v45
    %v222 = vunpack.c.l.b16 %v46
    %v223 = vunpack.c.l.b16 %v47
    %v224 = vunpack.c.l.b16 %v48
    %v225 = vunpack.c.l.b16 %v49
    %v226 = vunpack.c.l.b16 %v50
    %v227 = vunpack.c.l.b16 %v51
    %v228 = vunpack.c.l.b16 %v52
    %v229 = vunpack.c.l.b16 %v53
    %v230 = vunpack.c.l.b16 %v54
    %v231 = vunpack.c.l.b16 %v55
    %v232 = vunpack.c.l.b16 %v56
    %v233 = vunpack.c.l.b16 %v57
    %v234 = vunpack.c.l.b16 %v58
    %v235 = vunpack.c.l.b16 %v59
    %v236 = vunpack.c.l.b16 %v60
    %v237 = vunpack.c.l.b16 %v61
    %v238 = vunpack.c.l.b16 %v62
    %v239 = vunpack.c.l.b16 %v63
    %v240 = vunpack.c.l.b16 %v64
    %v241 = vunpack.c.l.b16 %v65
    %v242 = vunpack.c.l.b16 %v66
    %v243 = vunpack.c.l.b16 %v67
    %v244 = vunpack.c.l.b16 %v68
    %v245 = vunpack.c.l.b16 %v69
    %v246 = vunpack.c.l.b16 %v70
    %v247 = vunpack.c.l.b16 %v71
    %v248 = vunpack.c.l.b16 %v72
    %v249 = vunpack.c.l.b16 %v73
    %v250 = vunpack.c.l.b16 %v74
    %v251 = vunpack.c.l.b16 %v75
    %v252 = vunpack.c.l.b16 %v76
    %v253 = vunpack.c.l.b16 %v77
    %v254 = vunpack.c.l.b16 %v78
    %v255 = vunpack.c.l.b16 %v79
    %v256 = vunpack.c.l.b16 %v80
    %v257 = vunpack.c.l.b16 %v81
    %v258 = vunpack.c.l.b16 %v82
    %v259 = vunpack.c.l.b16 %v83
    %v260 = vunpack.c.l.b16 %v84
    %v261 = vunpack.c.l.b16 %v85
    %v262 = vunpack.c.l.b16 %v86
    %v263 = vunpack.c.l.b16 %v87
    %v264 = vunpack.c.l.b16 %v88
    %v265 = vunpack.c.l.b16 %v89
    %v266 = vunpack.c.l.b16 %v90
    %v267 = vunpack.c.l.b16 %v91
    %v268 = vunpack.c.l.b16 %v92
    %v269 = vunpack.c.l.b16 %v93
    %v270 = vunpack.c.l.b16 %v94
    %v271 = vunpack.c.l.b16 %v95
    %v272 = vunpack.c.l.b16 %v96
    %v273 = vunpack.c.l.b16 %v97
    %v274 = vunpack.c.l.b16 %v98
    %v275 = vunpack.c.l.b16 %v99
    %v276 = vunpack.c.l.b16 %v100
    %v277 = vunpack.c.l.b16 %v101
    %v278 = vunpack.c.l.b16 %v102
    %v279 = vunpack.c.l.b16 %v103
    %v280 = vunpack.c.l.b16 %v104
    %v281 = vunpack.c.l.b16 %v105
    %v282 = vunpack.c.l.b16 %v106
    %v283 = vunpack.c.l.b16 %v107
    %v284 = vunpack.c.l.b16 %v108
    %v285 = vunpack.c.l.b16 %v109
    %v286 = vunpack.c.l.b16 %v110
    %v287 = vpack.c.b16 %v208, %v207
    %v288 = vpack.c.b16 %v210, %v209
    %v289 = vpack.c.b16 %v212, %v211
    %v290 = vpack.c.b16 %v214, %v213
    %v291 = vpack.c.b16 %v216, %v215
    %v292 = vpack.c.b16 %v218, %v217
    %v293 = vpack.c.b16 %v220, %v219
    %v294 = vpack.c.b16 %v222, %v221
    %v295 = vpack.c.b16 %v224, %v223
    %v296 = vpack.c.b16 %v226, %v225
    %v297 = vpack.c.b16 %v228, %v227
    %v298 = vpack.c.b16 %v230, %v229
    %v299 = vpack.c.b16 %v232, %v231
    %v300 = vpack.c.b16 %v234, %v233
    %v301 = vpack.c.b16 %v236, %v235
    %v302 = vpack.c.b16 %v238, %v237
    %v303 = vpack.c.b16 %v240, %v239
    %v304 = vpack.c.b16 %v242, %v241
    %v305 = vpack.c.b16 %v244, %v243
    %v306 = vpack.c.b16 %v246, %v245
    %v307 = vpack.c.b16 %v248, %v247
    %v308 = vpack.c.b16 %v250, %v249
    %v309 = vpack.c.b16 %v252, %v251
    %v310 = vpack.c.b16 %v254, %v253
    %v311 = vpack.c.b16 %v256, %v255
    %v312 = vpack.c.b16 %v258, %v257
    %v313 = vpack.c.b16 %v260, %v259
    %v314 = vpack.c.b16 %v262, %v261
    %v315 = vpack.c.b16 %v264, %v263
    %v316 = vpack.c.b16 %v266, %v265
    %v317 = vpack.c.b16 %v268, %v267
    %v318 = vpack.c.b16 %v270, %v269
    %v319 = vpack.c.b16 %v272, %v271
    %v320 = vpack.c.b16 %v274, %v273
    %v321 = vpack.c.b16 %v276, %v275
    %v322 = vpack.c.b16 %v278, %v277
    %v323 = vpack.c.b16 %v280, %v279
    %v324 = vpack.c.b16 %v282, %v281
    %v325 = vpack.c.b16 %v284, %v283
    %v326 = vpack.c.b16 %v286, %v285
    %367 = vmatpush.bf16.msra.mxu0 %v294
    %368 = vmatpush.bf16.msra.mxu0 %v293
    %369 = vmatpush.bf16.msra.mxu0 %v292
    %370 = vmatpush.bf16.msra.mxu0 %v291
    %371 = vmatpush.bf16.msra.mxu0 %v290
    %372 = vmatpush.bf16.msra.mxu0 %v289
    %373 = vmatpush.bf16.msra.mxu0 %v288
    %374 = vmatpush.bf16.msra.mxu0 %v287
    %375 = vmatmul.bf16.gmra.mxu0 %v117
    %v376 = vpop.f32.mrf.mxu0
    %v377 = vadd.f32 %v113, %v376
    %v378 = vpop.f32.mrf.mxu0
    %379 = vdwg.mxu0
    %380 = vmatpush.bf16.msra.mxu0 %v302
    %381 = vmatpush.bf16.msra.mxu0 %v301
    %382 = vmatpush.bf16.msra.mxu0 %v300
    %383 = vmatpush.bf16.msra.mxu0 %v299
    %384 = vmatpush.bf16.msra.mxu0 %v298
    %385 = vmatpush.bf16.msra.mxu0 %v297
    %386 = vmatpush.bf16.msra.mxu0 %v296
    %387 = vmatpush.bf16.msra.mxu0 %v295
    %388 = vmatmul.bf16.gmra.mxu0 %v118
    %v389 = vpop.f32.mrf.mxu0
    %v390 = vadd.f32 %v377, %v389
    %v391 = vpop.f32.mrf.mxu0
    %392 = vdwg.mxu0
    %393 = vmatpush.bf16.msra.mxu0 %v310
    %394 = vmatpush.bf16.msra.mxu0 %v309
    %395 = vmatpush.bf16.msra.mxu0 %v308
    %396 = vmatpush.bf16.msra.mxu0 %v307
    %397 = vmatpush.bf16.msra.mxu0 %v306
    %398 = vmatpush.bf16.msra.mxu0 %v305
    %399 = vmatpush.bf16.msra.mxu0 %v304
    %400 = vmatpush.bf16.msra.mxu0 %v303
    %401 = vmatmul.bf16.gmra.mxu0 %v119
    %v402 = vpop.f32.mrf.mxu0
    %v403 = vadd.f32 %v390, %v402
    %v404 = vpop.f32.mrf.mxu0
    %405 = vdwg.mxu0
    %406 = vmatpush.bf16.msra.mxu0 %v318
    %407 = vmatpush.bf16.msra.mxu0 %v317
    %408 = vmatpush.bf16.msra.mxu0 %v316
    %409 = vmatpush.bf16.msra.mxu0 %v315
    %410 = vmatpush.bf16.msra.mxu0 %v314
    %411 = vmatpush.bf16.msra.mxu0 %v313
    %412 = vmatpush.bf16.msra.mxu0 %v312
    %413 = vmatpush.bf16.msra.mxu0 %v311
    %414 = vmatmul.bf16.gmra.mxu0 %v120
    %v415 = vpop.f32.mrf.mxu0
    %v416 = vadd.f32 %v403, %v415
    %v417 = vpop.f32.mrf.mxu0
    %418 = vdwg.mxu0
    %419 = vmatpush.bf16.msra.mxu0 %v326
    %420 = vmatpush.bf16.msra.mxu0 %v325
    %421 = vmatpush.bf16.msra.mxu0 %v324
    %422 = vmatpush.bf16.msra.mxu0 %v323
    %423 = vmatpush.bf16.msra.mxu0 %v322
    %424 = vmatpush.bf16.msra.mxu0 %v321
    %425 = vmatpush.bf16.msra.mxu0 %v320
    %426 = vmatpush.bf16.msra.mxu0 %v319
    %427 = vmatmul.bf16.gmra.mxu0 %v121
    %v428 = vpop.f32.mrf.mxu0
    %v429 = vadd.f32 %v416, %v428
    %v430 = vpop.f32.mrf.mxu0
    %431 = vdwg.mxu0
    %vm432 = vcmp.ge.f32.partialorder %v429, 0.0
    %v433 = vmul.f32 %v429, 0.2
    %v434 = vsel %vm432, %v429, %v433
    %v435 = vpack.c.bf16 %v434, %v434
    %v436 = vld [vmem:[%s3] sm:$0xff]
    %v437 = vld [vmem:[%s3 + $0x8] sm:$0xff]
    %v438 = vld [vmem:[%s3 + $0x10] sm:$0xff]
    %v439 = vld [vmem:[%s3 + $0x18] sm:$0xff]
    %v440 = vld [vmem:[%s3 + $0x20] sm:$0xff]
    %v441 = vld [vmem:[%s3 + $0x28] sm:$0xff]
    %v442 = vld [vmem:[%s3 + $0x30] sm:$0xff]
    %v443 = vld [vmem:[%s3 + $0x38] sm:$0xff]
    %v444 = vld [vmem:[%s4] sm:$0x3]
    %v446 = vperm.slane %v444, 0
    %v447 = vperm.slane %v444, 1
    %v458 = vunpack.c.l.b16 %v436
    %v459 = vunpack.c.h.b16 %v436
    %v460 = vunpack.c.l.b16 %v437
    %v461 = vunpack.c.h.b16 %v437
    %v462 = vunpack.c.l.b16 %v438
    %v463 = vunpack.c.h.b16 %v438
    %v464 = vunpack.c.l.b16 %v439
    %v465 = vunpack.c.h.b16 %v439
    %v466 = vunpack.c.l.b16 %v440
    %v467 = vunpack.c.h.b16 %v440
    %v468 = vunpack.c.l.b16 %v441
    %v469 = vunpack.c.h.b16 %v441
    %v470 = vunpack.c.l.b16 %v442
    %v471 = vunpack.c.h.b16 %v442
    %v472 = vunpack.c.l.b16 %v443
    %v473 = vunpack.c.h.b16 %v443
    %v474 = vpack.c.b16 %v460, %v458
    %v475 = vpack.c.b16 %v461, %v459
    %v476 = vpack.c.b16 %v464, %v462
    %v477 = vpack.c.b16 %v465, %v463
    %v478 = vpack.c.b16 %v468, %v466
    %v479 = vpack.c.b16 %v469, %v467
    %v480 = vpack.c.b16 %v472, %v470
    %v481 = vpack.c.b16 %v473, %v471
    %vm490 = vcmask 523264
    %v492 = vsel %vm490, %v435, 0
    %494 = vmatpush.bf16.msra.mxu0 0
    %495 = vmatpush.bf16.msra.mxu0 0
    %496 = vmatpush.bf16.msra.mxu0 0
    %497 = vmatpush.bf16.msra.mxu0 0
    %498 = vmatpush.bf16.msra.mxu0 %v480
    %499 = vmatpush.bf16.msra.mxu0 %v478
    %500 = vmatpush.bf16.msra.mxu0 %v476
    %501 = vmatpush.bf16.msra.mxu0 %v474
    %502 = vmatmul.bf16.gmra.mxu0 %v492
    %v503 = vpop.f32.mrf.mxu0
    %v504 = vadd.f32 %v446, %v503
    %v505 = vpop.f32.mrf.mxu0
    %506 = vdwg.mxu0
    %507 = vmatpush.bf16.msra.mxu0 0
    %508 = vmatpush.bf16.msra.mxu0 0
    %509 = vmatpush.bf16.msra.mxu0 0
    %510 = vmatpush.bf16.msra.mxu0 0
    %511 = vmatpush.bf16.msra.mxu0 %v481
    %512 = vmatpush.bf16.msra.mxu0 %v479
    %513 = vmatpush.bf16.msra.mxu0 %v477
    %514 = vmatpush.bf16.msra.mxu0 %v475
    %515 = vmatmul.bf16.gmra.mxu0 %v492
    %v516 = vpop.f32.mrf.mxu0
    %v517 = vadd.f32 %v447, %v516
    %v518 = vpop.f32.mrf.mxu0
    %519 = vdwg.mxu0
    %vm520 = vcmp.ge.f32.partialorder %v504, 0.0
    %vm521 = vcmp.ge.f32.partialorder %v517, 0.0
    %v522 = vmul.f32 %v504, 0.2
    %v523 = vmul.f32 %v517, 0.2
    %v524 = vsel %vm520, %v504, %v522
    %v525 = vsel %vm521, %v517, %v523
    %v526 = vld [vmem:[%s5] sm:$0x3]
    %v527 = vld [vmem:[#allocation2] sm:$0x1]
    %529 = vset.pattern.permute.xlu0 0
    %530 = vperm.xlu0 %529, %v527
    %v531 = vpop.permute.xlu0 %530
    %v533 = vperm.slane %v531, 0
    %v535 = vperm.slane %v526, 0
    %v536 = vperm.slane %v526, 1
    %539 = vmatpush.xpose.msra.mxu0 0.0
    %540 = vmatpush.xpose.msra.mxu0 0.0
    %541 = vmatpush.xpose.msra.mxu0 0.0
    %542 = vmatpush.xpose.msra.mxu0 0.0
    %543 = vmatpush.xpose.msra.mxu0 0.0
    %544 = vmatpush.xpose.msra.mxu0 0.0
    %545 = vmatpush.xpose.msra.mxu0 0.0
    %546 = vmatpush.xpose.msra.mxu0 0.0
    %547 = vmatpush.xpose.msra.mxu0 0.0
    %548 = vmatpush.xpose.msra.mxu0 0.0
    %549 = vmatpush.xpose.msra.mxu0 0.0
    %550 = vmatpush.xpose.msra.mxu0 0.0
    %551 = vmatpush.xpose.msra.mxu0 0.0
    %552 = vmatpush.xpose.msra.mxu0 0.0
    %553 = vmatpush.xpose.msra.mxu0 0.0
    %554 = vmatpush.xpose.msra.mxu0 %v524
    %555 = vmatmul.f32.gmra.mxu0 %v535
    %v556 = vpop.f32.mrf.mxu0
    %v557 = vadd.f32 %v533, %v556
    %558 = vdwg.mxu0
    %559 = vmatpush.xpose.msra.mxu0 0.0
    %560 = vmatpush.xpose.msra.mxu0 0.0
    %561 = vmatpush.xpose.msra.mxu0 0.0
    %562 = vmatpush.xpose.msra.mxu0 0.0
    %563 = vmatpush.xpose.msra.mxu0 0.0
    %564 = vmatpush.xpose.msra.mxu0 0.0
    %565 = vmatpush.xpose.msra.mxu0 0.0
    %566 = vmatpush.xpose.msra.mxu0 0.0
    %567 = vmatpush.xpose.msra.mxu0 0.0
    %568 = vmatpush.xpose.msra.mxu0 0.0
    %569 = vmatpush.xpose.msra.mxu0 0.0
    %570 = vmatpush.xpose.msra.mxu0 0.0
    %571 = vmatpush.xpose.msra.mxu0 0.0
    %572 = vmatpush.xpose.msra.mxu0 0.0
    %573 = vmatpush.xpose.msra.mxu0 0.0
    %574 = vmatpush.xpose.msra.mxu0 %v525
    %575 = vmatmul.f32.gmra.mxu0 %v536
    %v576 = vpop.f32.mrf.mxu0
    %v577 = vadd.f32 %v557, %v576
    %578 = vdwg.mxu0
    %v579 = vand.u32 2147483647, %v577
    %v580 = vsub.f32 0.0, %v579
    %v581 = vmul.f32 %v580, 1.442695
    %v582 = vpow.pop %v581
    %v583 = vadd.f32 %v582, 1.0
    %v584 = vrcp.pop %v583
    %v585 = vmul.f32 %v583, %v584
    %v586 = vsub.f32 1.0, %v585
    %v587 = vmul.f32 %v584, %v586
    %v588 = vadd.f32 %v584, %v587
    %vm589 = vweird.f32 %v583
    %vm590 = vweird.f32 %v584
    %vm591 = vmor %vm589, %vm590
    %v592 = vsel %vm591, %v584, %v588
    %v593 = vand.u32 2147483647, %v583
    %vm594 = vcmp.eq.f32.partialorder %v593, 8.507059e+37
    %v595 = vand.u32 %v583, 2147483648
    %v596 = vor.u32 1.1754944e-38, %v595
    %v597 = vsel %vm594, %v596, %v592
    %v598 = vmul.f32 %v582, %v597
    %vm599 = vcmp.ge.f32.partialorder %v577, 0.0
    %v600 = vsub.f32 1.0, %v598
    %v601 = vsel %vm599, %v600, %v598
    %vm602 = vcmask 8192
    %603 = vst.msk [vmem:[#allocation3] sm:$0x1] %vm602, %v601
    // Predicated region
    $region30: #{discriminator_z_forward.1} parent=1 // pred_check
      _
    $region31: #{discriminator_z_forward.1} parent=1 // pred_check_branch
      %605 = sbr.rel (0) target = $region33
    $region32: #{discriminator_z_forward.1} parent=1 // pred_region
      %607 = vsyncadd [#allocation4], 0
      %s609 = sshll.u32 [#allocation3], 4
      %s610 = int_to_ptr.vmem [resolvable:$true] %s609
      %s611 = sshll.u32 %s7, 4
      %s612 = int_to_ptr.hbm [resolvable:$true] %s611
      %614 = dma.vmem_to_hbm [thread:$0]  %s610, 16, %s612, [#allocation4]
    $region33: #{discriminator_z_forward.1} parent=1 // pred_fallthru
      _
    // Predicated region
    $region34: #{discriminator_z_forward.1} parent=1 // pred_check
      _
    $region35: #{discriminator_z_forward.1} parent=1 // pred_check_branch
      %616 = sbr.rel (0) target = $region37
    $region36: #{discriminator_z_forward.1} parent=1 // pred_region
      %618 = dma.done [#allocation4], 16
    $region37: #{discriminator_z_forward.1} parent=1 // pred_fallthru
      _
    %619 = vsyncpa [#allocation4], 1

</llo_original>
